<compile_context>
chip_gen: v6e
topology: v6e:2x2x1
jax: 0.10.0
libtpu: 0.0.40
codegen_flags: <defaults>
</compile_context>

<pallas_src>
import functools

import jax
import jax.numpy as jnp
from jax.experimental import pallas as pl
from jax.experimental.pallas import tpu as pltpu


def _channel_attention_kernel(x_ref, w1t_ref, w2_ref, o_ref, sum_ref, max_ref,
                              *, hw, thw, n_c):
    # x_ref:   (1, tc, thw)   one (channel-chunk, spatial-chunk) of one image
    # w1t_ref: (C, Hid)       fc[0] weight, pre-transposed (in=C on sublanes)
    # w2_ref:  (C, Hid)       fc[2] weight as stored (out=C on sublanes)
    # o_ref:   (1, C, 1)      sigmoid channel gate for this batch element
    # sum_ref: (n_c, tc, 1)   f32 running per-channel sums
    # max_ref: (n_c, tc, 1)   native-dtype running per-channel maxes
    c = pl.program_id(1)
    k = pl.program_id(2)
    n_k = pl.num_programs(2)
    c_idx = 0 if n_c == 1 else c                     # static index on the common path

    x = x_ref[0]                                     # (tc, thw), native dtype

    def accumulate(x_sum, x_max):
        # One cross-lane (XLU) reduce per pool per chunk -> tiny (tc, 1) partials.
        part_sum = jnp.sum(x_sum.astype(jnp.float32), axis=-1, keepdims=True)
        part_max = jnp.max(x_max, axis=-1, keepdims=True)   # stays in input dtype

        @pl.when(k == 0)                             # first spatial chunk: overwrite
        def _first():
            sum_ref[c_idx] = part_sum
            max_ref[c_idx] = part_max

        @pl.when(k > 0)                              # later chunks: accumulate
        def _rest():
            sum_ref[c_idx] = sum_ref[c_idx] + part_sum
            max_ref[c_idx] = jnp.maximum(max_ref[c_idx], part_max)

    if hw % thw != 0:
        # Ragged spatial tail: only the LAST chunk pays the masking VPU work.
        @pl.when(k < n_k - 1)
        def _full_chunk():
            accumulate(x, x)

        @pl.when(k == n_k - 1)
        def _tail_chunk():
            lane = jax.lax.broadcasted_iota(jnp.int32, x.shape, 1)
            valid = (k * thw + lane) < hw
            accumulate(jnp.where(valid, x, 0.0),        # 0 for the sum
                       jnp.where(valid, x, -jnp.inf))   # -inf for the max
    else:
        accumulate(x, x)

    @pl.when((c == pl.num_programs(1) - 1) & (k == n_k - 1))
    def _finalize():
        if n_c == 1:
            pooled_sum = sum_ref[0]                  # (C, 1) f32
            pooled_max = max_ref[0]                  # (C, 1) native dtype
        else:
            pooled_sum = jnp.concatenate([sum_ref[i] for i in range(n_c)], axis=0)
            pooled_max = jnp.concatenate([max_ref[i] for i in range(n_c)], axis=0)

        avg = pooled_sum * (1.0 / hw)                # divide by the TRUE H*W
        mx = pooled_max.astype(jnp.float32)

        w1t = w1t_ref[...].astype(jnp.float32)       # (C, Hid)
        w2 = w2_ref[...].astype(jnp.float32)         # (C, Hid)

        def fc(p):  # (C, 1) -> (C, 1); broadcast-mul + reduce, off the MXU
            h = jnp.sum(w1t * p, axis=0, keepdims=True)      # (1, Hid)
            h = jnp.maximum(h, 0.0)                          # ReLU
            return jnp.sum(w2 * h, axis=-1, keepdims=True)   # (C, 1)

        gate = jax.nn.sigmoid(fc(avg) + fc(mx))              # (C, 1)
        o_ref[0] = gate.astype(o_ref.dtype)


def _vmem_limit_bytes():
    """Generation-aware scoped-VMEM limit: ~3/4 of physical VMEM.

    v5e/v6e (128 MiB) -> 96 MiB, v7x (64 MiB) -> 48 MiB.  Conservative 48 MiB
    fallback if the hardware query is unavailable.
    """
    cap = 64 * 1024 * 1024
    try:
        cap = int(pltpu.get_tpu_info().vmem_capacity_bytes)
    except Exception:
        pass
    return min(112 * 1024 * 1024, max(32 * 1024 * 1024, (cap * 3) // 4))


def _pick_tiles(c, hw, itemsize, target_bytes):
    """Pick (tc, thw) for the (1, tc, thw) input block.

    Returns tc dividing C (tc == C or tc % 8 == 0) and thw == HW or a multiple
    of 128, aiming for ~target_bytes per block.
    """
    # Whole per-image feature map fits in one block -> fully local reduce
    # (covers the common CBAM regime: C <= ~2048, HW <= ~196).
    if c * hw * itemsize <= target_bytes:
        return c, hw
    if hw >= 256:
        # Spatial tiling: keep all channels, tile HW on lanes.
        thw = max(128, (target_bytes // (c * itemsize)) // 128 * 128)
        return c, min(thw, hw)
    # Small HW but huge C: channel tiling, full HW per block.
    tc = max(8, min(c, (target_bytes // (hw * itemsize)) // 8 * 8))
    while tc > 8 and c % tc != 0:
        tc -= 8
    if c % tc != 0:
        tc = c                                       # fall back: single channel block
    return tc, hw


def channel_attention(x_nchw, w1, w2, *, tc=None, thw=None):
    """CBAM channel attention gate.

    x_nchw: (B, C, H, W); w1: (C//ratio, C); w2: (C, C//ratio).
    Returns the sigmoid gate of shape (B, C, 1, 1), matching the PyTorch module.
    """
    B, C, H, W = x_nchw.shape
    Hid = w1.shape[0]
    assert w1.shape == (Hid, C) and w2.shape == (C, Hid)
    HW = H * W
    itemsize = x_nchw.dtype.itemsize

    vmem_limit = _vmem_limit_bytes()
    target = min(4 * 1024 * 1024, vmem_limit // 16)  # ~2-4 MiB per input block
    auto_tc, auto_thw = _pick_tiles(C, HW, itemsize, target)
    tc = auto_tc if tc is None else tc
    thw = auto_thw if thw is None else thw
    assert thw == HW or (thw % 128 == 0 and thw <= HW), \
        "spatial tile must equal HW or be a multiple of 128 (<= HW)"
    assert C % tc == 0 and (tc == C or tc % 8 == 0), \
        "channel tile must divide C and be a multiple of 8 (or equal C)"
    n_c = C // tc
    n_k = pl.cdiv(HW, thw)

    # Free reshape: keep NCHW, flatten spatial onto the lane axis (no transpose,
    # no extra HBM pass over the activation).
    x = x_nchw.reshape(B, C, HW)
    w1t = jnp.transpose(w1, (1, 0))                  # (C, Hid) -- tiny, one-off

    kernel = functools.partial(_channel_attention_kernel, hw=HW, thw=thw, n_c=n_c)

    cost = pl.CostEstimate(
        flops=2 * B * HW * C + 8 * B * C * Hid,
        transcendentals=B * C,
        bytes_accessed=B * HW * C * itemsize
        + 2 * C * Hid * w1.dtype.itemsize
        + B * C * itemsize,
    )

    out = pl.pallas_call(
        kernel,
        out_shape=jax.ShapeDtypeStruct((B, C, 1), x_nchw.dtype),
        grid_spec=pltpu.PrefetchScalarGridSpec(
            num_scalar_prefetch=0,
            grid=(B, n_c, n_k),
            in_specs=[
                pl.BlockSpec((1, tc, thw), lambda b, c, k: (b, c, k)),
                pl.BlockSpec((C, Hid), lambda b, c, k: (0, 0)),
                pl.BlockSpec((C, Hid), lambda b, c, k: (0, 0)),
            ],
            out_specs=pl.BlockSpec((1, C, 1), lambda b, c, k: (b, 0, 0)),
            scratch_shapes=[
                pltpu.VMEM((n_c, tc, 1), jnp.float32),    # running per-channel sums
                pltpu.VMEM((n_c, tc, 1), x_nchw.dtype),   # running per-channel maxes
            ],
        ),
        compiler_params=pltpu.CompilerParams(
            dimension_semantics=("parallel", "arbitrary", "arbitrary"),
            vmem_limit_bytes=vmem_limit,
        ),
        cost_estimate=cost,
    )(x, w1t, w2)

    return out.reshape(B, C, 1, 1)


def _reference(x_nchw, w1, w2):
    # Pure-JAX reference matching the PyTorch forward.
    avg = jnp.mean(x_nchw, axis=(2, 3))              # (B, C)
    mx = jnp.max(x_nchw, axis=(2, 3))                # (B, C)

    def fc(p):
        h = jnp.maximum(p @ w1.T, 0.0)               # (B, Hid)
        return h @ w2.T                              # (B, C)

    return jax.nn.sigmoid(fc(avg) + fc(mx)).reshape(*avg.shape, 1, 1)


if __name__ == "__main__":
    key = jax.random.PRNGKey(0)
    kx, k1, k2, kx2, kx3 = jax.random.split(key, 5)

    # in_planes must be >= 16 (ratio=16) for the module to be well-defined.
    B, C = 2, 32
    Hid = C // 16

    # 1x1 conv weights (bias=False): fc[0].weight -> (Hid, C); fc[2].weight -> (C, Hid)
    w1 = jax.random.normal(k1, (Hid, C), dtype=jnp.float32) * (1.0 / jnp.sqrt(C))
    w2 = jax.random.normal(k2, (C, Hid), dtype=jnp.float32) * (1.0 / jnp.sqrt(Hid))

    # 1) Default path: whole (C, HW) feature map in one block per image.
    x = jax.random.normal(kx, (B, C, 16, 16), dtype=jnp.float32)
    ref = _reference(x, w1, w2)
    out = jax.block_until_ready(channel_attention(x, w1, w2))
    assert out.shape == (B, C, 1, 1)
    assert jnp.allclose(out, ref, atol=1e-5, rtol=1e-5)

    # 2) Spatial-tiled path, evenly divisible chunks (HW=256, thw=128).
    out_s = jax.block_until_ready(channel_attention(x, w1, w2, thw=128))
    assert jnp.allclose(out_s, ref, atol=1e-5, rtol=1e-5)

    # 3) Spatial-tiled path with a ragged, masked LAST chunk only (HW=180).
    x2 = jax.random.normal(kx2, (B, C, 20, 9), dtype=jnp.float32)
    ref2 = _reference(x2, w1, w2)
    out2 = jax.block_until_ready(channel_attention(x2, w1, w2, thw=128))
    assert jnp.allclose(out2, ref2, atol=1e-5, rtol=1e-5)

    # 4) Channel-tiled path (small HW; force tc < C to exercise it at small C).
    x3 = jax.random.normal(kx3, (B, C, 7, 7), dtype=jnp.float32)
    ref3 = _reference(x3, w1, w2)
    out3 = jax.block_until_ready(channel_attention(x3, w1, w2, tc=8))
    assert jnp.allclose(out3, ref3, atol=1e-5, rtol=1e-5)

    # 5) bf16 activations: native-dtype max path, f32 sum accumulation.
    xb = x.astype(jnp.bfloat16)
    refb = _reference(xb.astype(jnp.float32), w1, w2)
    outb = jax.block_until_ready(channel_attention(xb, w1, w2))
    assert outb.dtype == jnp.bfloat16
    assert jnp.allclose(outb.astype(jnp.float32), refb, atol=1e-2)

    print("KERNEL_OK")
</pallas_src>

<mosaic_0001>
module attributes {stable_mosaic.version = 11 : i64} {
  func.func @_channel_attention_kernel(%arg0: i32, %arg1: i32, %arg2: i32, %arg3: memref<1x32x256xf32, #tpu.memory_space<vmem>>, %arg4: memref<32x2xf32, #tpu.memory_space<vmem>>, %arg5: memref<32x2xf32, #tpu.memory_space<vmem>>, %arg6: memref<1x32x1xf32, #tpu.memory_space<vmem>>, %arg7: memref<1x32x1xf32, #tpu.memory_space<vmem>>, %arg8: memref<1x32x1xf32, #tpu.memory_space<vmem>>) attributes {dimension_semantics = [#tpu.dimension_semantics<parallel>, #tpu.dimension_semantics<arbitrary>, #tpu.dimension_semantics<arbitrary>], iteration_bounds = array<i64: 2, 1, 1>, scalar_prefetch = 0 : i64, scratch_operands = 2 : i64, tpu.core_type = #tpu.core_type<tc>, window_params = [{transform_indices = @transform_0, window_bounds = array<i64: 1, 32, 256>}, {pipeline_mode = #tpu.pipeline_mode<synchronous>, transform_indices = @transform_1, window_bounds = array<i64: 32, 2>}, {pipeline_mode = #tpu.pipeline_mode<synchronous>, transform_indices = @transform_2, window_bounds = array<i64: 32, 2>}, {transform_indices = @transform_3, window_bounds = array<i64: 1, 32, 1>}]} {
    %c0 = arith.constant 0 : index
    %c0_0 = arith.constant 0 : index
    %c0_1 = arith.constant 0 : index
    %0 = vector.load %arg3[%c0, %c0_0, %c0_1] : memref<1x32x256xf32, #tpu.memory_space<vmem>>, vector<1x32x256xf32>
    %1 = vector.shape_cast %0 : vector<1x32x256xf32> to vector<32x256xf32>
    %cst = arith.constant dense<0.000000e+00> : vector<32xf32>
    %2 = vector.multi_reduction <add>, %1, %cst [1] : vector<32x256xf32> to vector<32xf32>
    %3 = vector.shape_cast %2 : vector<32xf32> to vector<32x1xf32>
    %cst_2 = arith.constant dense<0xFF800000> : vector<32xf32>
    %4 = vector.multi_reduction <maximumf>, %1, %cst_2 [1] : vector<32x256xf32> to vector<32xf32>
    %5 = vector.shape_cast %4 : vector<32xf32> to vector<32x1xf32>
    %c0_i32 = arith.constant 0 : i32
    %6 = arith.cmpi eq, %arg2, %c0_i32 : i32
    %7 = arith.extui %6 : i1 to i32
    %c0_i32_3 = arith.constant 0 : i32
    %8 = arith.cmpi ne, %7, %c0_i32_3 : i32
    scf.if %8 {
      %c0_9 = arith.constant 0 : index
      %c0_10 = arith.constant 0 : index
      %c0_11 = arith.constant 0 : index
      %17 = vector.load %arg7[%c0_9, %c0_10, %c0_11] : memref<1x32x1xf32, #tpu.memory_space<vmem>>, vector<1x32x1xf32>
      %18 = vector.shape_cast %17 : vector<1x32x1xf32> to vector<32x1xf32>
      %19 = vector.shape_cast %3 : vector<32x1xf32> to vector<1x32x1xf32>
      tpu.vector_store %arg7[%c0_9, %c0_10, %c0_11], %19 {strides = array<i32>} : memref<1x32x1xf32, #tpu.memory_space<vmem>>, vector<1x32x1xf32>,
      %c0_12 = arith.constant 0 : index
      %c0_13 = arith.constant 0 : index
      %c0_14 = arith.constant 0 : index
      %20 = vector.load %arg8[%c0_12, %c0_13, %c0_14] : memref<1x32x1xf32, #tpu.memory_space<vmem>>, vector<1x32x1xf32>
      %21 = vector.shape_cast %20 : vector<1x32x1xf32> to vector<32x1xf32>
      %22 = vector.shape_cast %5 : vector<32x1xf32> to vector<1x32x1xf32>
      tpu.vector_store %arg8[%c0_12, %c0_13, %c0_14], %22 {strides = array<i32>} : memref<1x32x1xf32, #tpu.memory_space<vmem>>, vector<1x32x1xf32>,
    } else {
    }
    %c0_i32_4 = arith.constant 0 : i32
    %9 = arith.cmpi sgt, %arg2, %c0_i32_4 : i32
    %10 = arith.extui %9 : i1 to i32
    %c0_i32_5 = arith.constant 0 : i32
    %11 = arith.cmpi ne, %10, %c0_i32_5 : i32
    scf.if %11 {
      %c0_9 = arith.constant 0 : index
      %c0_10 = arith.constant 0 : index
      %c0_11 = arith.constant 0 : index
      %17 = vector.load %arg7[%c0_9, %c0_10, %c0_11] : memref<1x32x1xf32, #tpu.memory_space<vmem>>, vector<1x32x1xf32>
      %18 = vector.shape_cast %17 : vector<1x32x1xf32> to vector<32x1xf32>
      %19 = arith.addf %18, %3 : vector<32x1xf32>
      %c0_12 = arith.constant 0 : index
      %c0_13 = arith.constant 0 : index
      %c0_14 = arith.constant 0 : index
      %20 = vector.load %arg7[%c0_12, %c0_13, %c0_14] : memref<1x32x1xf32, #tpu.memory_space<vmem>>, vector<1x32x1xf32>
      %21 = vector.shape_cast %20 : vector<1x32x1xf32> to vector<32x1xf32>
      %22 = vector.shape_cast %19 : vector<32x1xf32> to vector<1x32x1xf32>
      tpu.vector_store %arg7[%c0_12, %c0_13, %c0_14], %22 {strides = array<i32>} : memref<1x32x1xf32, #tpu.memory_space<vmem>>, vector<1x32x1xf32>,
      %c0_15 = arith.constant 0 : index
      %c0_16 = arith.constant 0 : index
      %c0_17 = arith.constant 0 : index
      %23 = vector.load %arg8[%c0_15, %c0_16, %c0_17] : memref<1x32x1xf32, #tpu.memory_space<vmem>>, vector<1x32x1xf32>
      %24 = vector.shape_cast %23 : vector<1x32x1xf32> to vector<32x1xf32>
      %25 = arith.maximumf %24, %5 : vector<32x1xf32>
      %c0_18 = arith.constant 0 : index
      %c0_19 = arith.constant 0 : index
      %c0_20 = arith.constant 0 : index
      %26 = vector.load %arg8[%c0_18, %c0_19, %c0_20] : memref<1x32x1xf32, #tpu.memory_space<vmem>>, vector<1x32x1xf32>
      %27 = vector.shape_cast %26 : vector<1x32x1xf32> to vector<32x1xf32>
      %28 = vector.shape_cast %25 : vector<32x1xf32> to vector<1x32x1xf32>
      tpu.vector_store %arg8[%c0_18, %c0_19, %c0_20], %28 {strides = array<i32>} : memref<1x32x1xf32, #tpu.memory_space<vmem>>, vector<1x32x1xf32>,
    } else {
    }
    %c0_i32_6 = arith.constant 0 : i32
    %12 = arith.cmpi eq, %arg1, %c0_i32_6 : i32
    %c0_i32_7 = arith.constant 0 : i32
    %13 = arith.cmpi eq, %arg2, %c0_i32_7 : i32
    %14 = arith.andi %12, %13 : i1
    %15 = arith.extui %14 : i1 to i32
    %c0_i32_8 = arith.constant 0 : i32
    %16 = arith.cmpi ne, %15, %c0_i32_8 : i32
    scf.if %16 {
      %c0_9 = arith.constant 0 : index
      %c0_10 = arith.constant 0 : index
      %c0_11 = arith.constant 0 : index
      %17 = vector.load %arg7[%c0_9, %c0_10, %c0_11] : memref<1x32x1xf32, #tpu.memory_space<vmem>>, vector<1x32x1xf32>
      %18 = vector.shape_cast %17 : vector<1x32x1xf32> to vector<32x1xf32>
      %c0_12 = arith.constant 0 : index
      %c0_13 = arith.constant 0 : index
      %c0_14 = arith.constant 0 : index
      %19 = vector.load %arg8[%c0_12, %c0_13, %c0_14] : memref<1x32x1xf32, #tpu.memory_space<vmem>>, vector<1x32x1xf32>
      %20 = vector.shape_cast %19 : vector<1x32x1xf32> to vector<32x1xf32>
      %cst_15 = arith.constant 3.906250e-03 : f32
      %21 = vector.broadcast %cst_15 : f32 to vector<32x1xf32>
      %22 = arith.mulf %18, %21 : vector<32x1xf32>
      %c0_16 = arith.constant 0 : index
      %c0_17 = arith.constant 0 : index
      %23 = vector.load %arg4[%c0_16, %c0_17] : memref<32x2xf32, #tpu.memory_space<vmem>>, vector<32x2xf32>
      %c0_18 = arith.constant 0 : index
      %c0_19 = arith.constant 0 : index
      %24 = vector.load %arg5[%c0_18, %c0_19] : memref<32x2xf32, #tpu.memory_space<vmem>>, vector<32x2xf32>
      %25 = vector.broadcast %22 : vector<32x1xf32> to vector<32x2xf32>
      %26 = arith.mulf %23, %25 : vector<32x2xf32>
      %cst_20 = arith.constant dense<0.000000e+00> : vector<2xf32>
      %27 = vector.multi_reduction <add>, %26, %cst_20 [0] : vector<32x2xf32> to vector<2xf32>
      %28 = vector.shape_cast %27 : vector<2xf32> to vector<1x2xf32>
      %cst_21 = arith.constant 0.000000e+00 : f32
      %29 = vector.broadcast %cst_21 : f32 to vector<1x2xf32>
      %30 = arith.maximumf %28, %29 : vector<1x2xf32>
      %31 = vector.broadcast %30 : vector<1x2xf32> to vector<32x2xf32>
      %32 = arith.mulf %24, %31 : vector<32x2xf32>
      %cst_22 = arith.constant dense<0.000000e+00> : vector<32xf32>
      %33 = vector.multi_reduction <add>, %32, %cst_22 [1] : vector<32x2xf32> to vector<32xf32>
      %34 = vector.shape_cast %33 : vector<32xf32> to vector<32x1xf32>
      %35 = vector.broadcast %20 : vector<32x1xf32> to vector<32x2xf32>
      %36 = arith.mulf %23, %35 : vector<32x2xf32>
      %cst_23 = arith.constant dense<0.000000e+00> : vector<2xf32>
      %37 = vector.multi_reduction <add>, %36, %cst_23 [0] : vector<32x2xf32> to vector<2xf32>
      %38 = vector.shape_cast %37 : vector<2xf32> to vector<1x2xf32>
      %cst_24 = arith.constant 0.000000e+00 : f32
      %39 = vector.broadcast %cst_24 : f32 to vector<1x2xf32>
      %40 = arith.maximumf %38, %39 : vector<1x2xf32>
      %41 = vector.broadcast %40 : vector<1x2xf32> to vector<32x2xf32>
      %42 = arith.mulf %24, %41 : vector<32x2xf32>
      %cst_25 = arith.constant dense<0.000000e+00> : vector<32xf32>
      %43 = vector.multi_reduction <add>, %42, %cst_25 [1] : vector<32x2xf32> to vector<32xf32>
      %44 = vector.shape_cast %43 : vector<32xf32> to vector<32x1xf32>
      %45 = arith.addf %34, %44 : vector<32x1xf32>
      %46 = arith.negf %45 : vector<32x1xf32>
      %47 = math.exp %46 : vector<32x1xf32>
      %cst_26 = arith.constant 1.000000e+00 : f32
      %48 = vector.broadcast %cst_26 : f32 to vector<32x1xf32>
      %49 = arith.addf %48, %47 : vector<32x1xf32>
      %50 = arith.divf %48, %49 : vector<32x1xf32>
      %c0_27 = arith.constant 0 : index
      %c0_28 = arith.constant 0 : index
      %c0_29 = arith.constant 0 : index
      %51 = vector.load %arg6[%c0_27, %c0_28, %c0_29] : memref<1x32x1xf32, #tpu.memory_space<vmem>>, vector<1x32x1xf32>
      %52 = vector.shape_cast %51 : vector<1x32x1xf32> to vector<32x1xf32>
      %53 = vector.shape_cast %50 : vector<32x1xf32> to vector<1x32x1xf32>
      tpu.vector_store %arg6[%c0_27, %c0_28, %c0_29], %53 {strides = array<i32>} : memref<1x32x1xf32, #tpu.memory_space<vmem>>, vector<1x32x1xf32>,
    } else {
    }
    return
  }
  func.func @transform_0(%arg0: i32, %arg1: i32, %arg2: i32) -> (i32, i32, i32) {
    %c0_i32 = arith.constant 0 : i32
    return %arg0, %arg1, %arg2 : i32, i32, i32
  }
  func.func @transform_1(%arg0: i32, %arg1: i32, %arg2: i32) -> (i32, i32) {
    %c0_i32 = arith.constant 0 : i32
    %c0_i32_0 = arith.constant 0 : i32
    %c0_i32_1 = arith.constant 0 : i32
    return %c0_i32, %c0_i32_0 : i32, i32
  }
  func.func @transform_2(%arg0: i32, %arg1: i32, %arg2: i32) -> (i32, i32) {
    %c0_i32 = arith.constant 0 : i32
    %c0_i32_0 = arith.constant 0 : i32
    %c0_i32_1 = arith.constant 0 : i32
    return %c0_i32, %c0_i32_0 : i32, i32
  }
  func.func @transform_3(%arg0: i32, %arg1: i32, %arg2: i32) -> (i32, i32, i32) {
    %c0_i32 = arith.constant 0 : i32
    %c0_i32_0 = arith.constant 0 : i32
    %c0_i32_1 = arith.constant 0 : i32
    return %arg0, %c0_i32, %c0_i32_0 : i32, i32, i32
  }
}

</mosaic_0001>

<llo_original>
// kernel: tpu_custom_call.1
$region0: #{tpu_custom_call.1}
  #allocation0 [shape = 'u32[]', space=smem, size = 0x4, offset = 0x4, fixed_abs, tag = 'smem constant byte address 0x4 - core index']
  #allocation1 [shape = 'u32[144,128]{1,0:T(1,128)}', space=vmem, size = 0x12000, scoped, tag = 'internal scratch']
  #allocation2 [shape = 'f32[1,32,1]{2,1,0:T(8,128)}', space=vmem, size = 0x4000, scoped, tag = 'scratch operand']
  #allocation3 [shape = 'f32[1,32,1]{2,1,0:T(8,128)}', space=vmem, size = 0x4000, scoped, tag = 'scratch operand']
  %s0 = inlined_call_operand.hbm [shape: f32[2,32,256], index: 0, kind: input, shape index: {}]
  %s1 = inlined_call_operand.vmem [shape: f32[32,2], index: 1, kind: input, shape index: {}]
  %s2 = inlined_call_operand.vmem [shape: f32[32,2], index: 2, kind: input, shape index: {}]
  %s3 = inlined_call_operand.vmem [shape: f32[2,32,1], index: 3, kind: output, shape index: {}]
  %s4 = sld [smem:[#allocation0]]
  $region61: #{tpu_custom_call.1} parent=0
    _
  %s6 = ssub.s32 1, %s4
  %s7 = scalar_select 0, %s6, %s4
  $region1: #{tpu_custom_call.1} parent=0
    #allocation4 [shape = 'u8[65536]{0}', space=vmem, size = 0x10000, scoped, tag = 'input window, operand 0']
    #allocation5 [shape = 's32[2]{0}', space=sflag, size = 0x8, scoped, tag = 'scoped memory for tpu_custom_call.1']
    %8 = vsyncpa [#allocation5], 0
    %s9 = scalar_lea.sflag [#allocation5], 1
    %10 = vsyncpa %s9, 0
    loop: start=0, step=1, limit=4
    $region2: #{tpu_custom_call.1} parent=1 // loop_pre_header
      _
    $region3: #{tpu_custom_call.1} parent=1 // loop_header
      %s12 = sphi 0, %s16
      %p13 = scmp.ge.s32.totalorder %s12, 4
      %s19 = sphi 0, %s38
      %s20 = sphi 0, %s34
      %s21 = sphi 0, %s30
      %s22 = sphi 0, %s19
      %s23 = sphi 0, %s20
      %s24 = sphi 0, %s21
      %s25 = sphi 0, %s22
      %s26 = sphi 0, %s23
      %s27 = sphi 0, %s24
      %s45 = sphi 0, %s47
      %s48 = sphi 0, %s45
      %s49 = sphi 0, %s48
      %s65 = sphi 0, %s49
      %s69 = sphi 0, %s69
      %s71 = sphi 0, %s69
      %s72 = sphi 0, %s71
      %s86 = sphi 0, %s72
      %s90 = sphi 0, %s90
      %s92 = sphi 0, %s90
      %s93 = sphi 0, %s92
      %s107 = sphi 0, %s93
      %s113 = sphi 0, %s115
      %s116 = sphi 0, %s113
      %s117 = sphi 0, %s116
      %s133 = sphi 0, %s117
    $region4: #{tpu_custom_call.1} parent=1 // loop_header_branch
      %15 = sbr.rel (%p13) target = $region8
    $region5: #{tpu_custom_call.1} parent=1 // loop_body
      %s17 = ssub.s32 %s12, 1
      %s18 = ssub.s32 %s12, 2
      %s28 = sadd.s32 1, %s21
      %p29 = scmp.ge.s32.totalorder %s28, 1
      %s30 = scalar_select %p29, 0, %s28
      %s31 = sadd.s32 1, %s20
      %s32 = scalar_select %p29, %s31, %s20
      %p33 = scmp.ge.s32.totalorder %s32, 1
      %s34 = scalar_select %p33, 0, %s32
      %s35 = sadd.s32 1, %s19
      %s36 = scalar_select %p33, %s35, %s19
      %p37 = scmp.ge.s32.totalorder %s36, 2
      %s38 = scalar_select %p37, 0, %s36
      %s39 = ssub.s32 %s19, %s38
      %s40 = ssub.s32 %s20, %s34
      %s41 = sor.u32 %s39, %s40
      %s42 = ssub.s32 %s21, %s30
      %s43 = sor.u32 %s41, %s42
      %p44 = scmp.eq.s32.totalorder %s43, 0
      %s46 = sadd.s32 %s45, 1
      %s47 = scalar_select %p44, %s45, %s46
      %p50 = pneg %p44
      %p51 = scmp.eq.s32.totalorder %s12, 1
      %p52 = por %p50, %p51
      %p53 = scmp.ne.s32.totalorder %s45, %s48
      %p54 = scmp.eq.s32.totalorder %s12, 0
      %p55 = por %p53, %p54
      %p56 = scmp.ne.s32.totalorder %s45, %s48
      %p57 = scmp.eq.s32.totalorder %s17, 1
      %p58 = por %p56, %p57
      %p59 = scmp.ne.s32.totalorder %s48, %s49
      %p60 = scmp.eq.s32.totalorder %s17, 0
      %p61 = por %p59, %p60
      %p62 = scmp.ne.s32.totalorder %s48, %s49
      %p63 = scmp.eq.s32.totalorder %s18, 1
      %p64 = por %p62, %p63
      %p66 = scmp.ne.s32.totalorder %s49, %s65
      %p67 = scmp.eq.s32.totalorder %s18, 0
      %p68 = por %p66, %p67
      %s70 = sadd.s32 %s69, 1
      %p73 = scmp.eq.s32.totalorder %s12, 1
      %p74 = scmp.ne.s32.totalorder %s69, %s71
      %p75 = scmp.eq.s32.totalorder %s12, 0
      %p76 = por %p74, %p75
      %p77 = scmp.ne.s32.totalorder %s69, %s71
      %p78 = scmp.eq.s32.totalorder %s17, 1
      %p79 = por %p77, %p78
      %p80 = scmp.ne.s32.totalorder %s71, %s72
      %p81 = scmp.eq.s32.totalorder %s17, 0
      %p82 = por %p80, %p81
      %p83 = scmp.ne.s32.totalorder %s71, %s72
      %p84 = scmp.eq.s32.totalorder %s18, 1
      %p85 = por %p83, %p84
      %p87 = scmp.ne.s32.totalorder %s72, %s86
      %p88 = scmp.eq.s32.totalorder %s18, 0
      %p89 = por %p87, %p88
      %s91 = sadd.s32 %s90, 1
      %p94 = scmp.eq.s32.totalorder %s12, 1
      %p95 = scmp.ne.s32.totalorder %s90, %s92
      %p96 = scmp.eq.s32.totalorder %s12, 0
      %p97 = por %p95, %p96
      %p98 = scmp.ne.s32.totalorder %s90, %s92
      %p99 = scmp.eq.s32.totalorder %s17, 1
      %p100 = por %p98, %p99
      %p101 = scmp.ne.s32.totalorder %s92, %s93
      %p102 = scmp.eq.s32.totalorder %s17, 0
      %p103 = por %p101, %p102
      %p104 = scmp.ne.s32.totalorder %s92, %s93
      %p105 = scmp.eq.s32.totalorder %s18, 1
      %p106 = por %p104, %p105
      %p108 = scmp.ne.s32.totalorder %s93, %s107
      %p109 = scmp.eq.s32.totalorder %s18, 0
      %p110 = por %p108, %p109
      %s111 = ssub.s32 %s19, %s38
      %p112 = scmp.eq.s32.totalorder %s111, 0
      %s114 = sadd.s32 %s113, 1
      %s115 = scalar_select %p112, %s113, %s114
      %p118 = pneg %p112
      %p119 = scmp.eq.s32.totalorder %s12, 1
      %p120 = por %p118, %p119
      %p121 = scmp.ne.s32.totalorder %s113, %s116
      %p122 = scmp.eq.s32.totalorder %s12, 0
      %p123 = por %p121, %p122
      %p124 = scmp.ne.s32.totalorder %s113, %s116
      %p125 = scmp.eq.s32.totalorder %s17, 1
      %p126 = por %p124, %p125
      %p127 = scmp.ne.s32.totalorder %s116, %s117
      %p128 = scmp.eq.s32.totalorder %s17, 0
      %p129 = por %p127, %p128
      %p130 = scmp.ne.s32.totalorder %s116, %s117
      %p131 = scmp.eq.s32.totalorder %s18, 1
      %p132 = por %p130, %p131
      %p134 = scmp.ne.s32.totalorder %s117, %s133
      %p135 = scmp.eq.s32.totalorder %s18, 0
      %p136 = por %p134, %p135
      %p137 = scmp.le.s32.totalorder 1, %s12
      %p138 = scmp.lt.s32.totalorder %s12, 3
      %p139 = pnand %p137, %p138
      %p140 = pneg %p139
      // Predicated region
      $region9: #{tpu_custom_call.1} parent=5 // pred_check
        _
      $region10: #{tpu_custom_call.1} parent=5 // pred_check_branch
        %142 = sbr.rel (%p139) target = $region12
      $region11: #{tpu_custom_call.1} parent=5 // pred_region
        %s143 = ssub.s32 %s12, 1
        // Predicated region
        $region13: #{tpu_custom_call.1} parent=11 // pred_check
          %p144 = pneg %p82
        $region14: #{tpu_custom_call.1} parent=11 // pred_check_branch
          %146 = sbr.rel (%p144) target = $region16
        $region15: #{tpu_custom_call.1} parent=11 // pred_region
          _
        $region16: #{tpu_custom_call.1} parent=11 // pred_fallthru
          _
        // Predicated region
        $region17: #{tpu_custom_call.1} parent=11 // pred_check
          %p147 = pneg %p103
        $region18: #{tpu_custom_call.1} parent=11 // pred_check_branch
          %149 = sbr.rel (%p147) target = $region20
        $region19: #{tpu_custom_call.1} parent=11 // pred_region
          _
        $region20: #{tpu_custom_call.1} parent=11 // pred_fallthru
          _
      $region12: #{tpu_custom_call.1} parent=5 // pred_fallthru
        _
      %p150 = scmp.lt.s32.totalorder %s12, 2
      // Predicated region
      $region21: #{tpu_custom_call.1} parent=5 // pred_check
        %p151 = pneg %p150
      $region22: #{tpu_custom_call.1} parent=5 // pred_check_branch
        %153 = sbr.rel (%p151) target = $region24
      $region23: #{tpu_custom_call.1} parent=5 // pred_region
        // Predicated region
        $region25: #{tpu_custom_call.1} parent=23 // pred_check
          %p154 = pneg %p55
        $region26: #{tpu_custom_call.1} parent=23 // pred_check_branch
          %156 = sbr.rel (%p154) target = $region28
        $region27: #{tpu_custom_call.1} parent=23 // pred_region
          %s157 = sand.u32 %s45, 1
          %s158 = scalar_lea.sflag [#allocation5], %s157
          %s159 = sand.u32 %s45, 1
          %s160 = smul.addr %s159, 64
          %s161 = scalar_lea.vmem [#allocation4], %s160
          %s162 = smul.u32 4, %s20
          %s163 = smul.u32 2, %s21
          %s165 = ssub.s32 1024, 1024
          %166 = vsyncadd %s158, %s165
          %s167 = smul.addr %s162, 2
          %s168 = sadd.s32 %s163, %s167
          %s169 = smul.addr %s19, 8
          %s170 = sadd.s32 %s168, %s169
          %s171 = smul.addr %s170, 128
          %s172 = scalar_lea.hbm %s0, %s171
          %s173 = sshll.u32 %s161, 4
          %s174 = int_to_ptr.vmem [resolvable:$true] %s173
          %179 = dma.hbm_to_vmem [thread:$0]  %s172, 1024, %s174, %s158, 256, 256, 16
        $region28: #{tpu_custom_call.1} parent=23 // pred_fallthru
          _
      $region24: #{tpu_custom_call.1} parent=5 // pred_fallthru
        _
      %p180 = scmp.le.s32.totalorder 1, %s12
      %p181 = scmp.lt.s32.totalorder %s12, 3
      %p182 = pnand %p180, %p181
      %p183 = pneg %p182
      // Predicated region
      $region29: #{tpu_custom_call.1} parent=5 // pred_check
        _
      $region30: #{tpu_custom_call.1} parent=5 // pred_check_branch
        %185 = sbr.rel (%p182) target = $region32
      $region31: #{tpu_custom_call.1} parent=5 // pred_region
        %s186 = ssub.s32 %s12, 1
        %s187 = sand.u32 %s48, 1
        %s188 = scalar_lea.sflag [#allocation5], %s187
        %s189 = sand.u32 %s48, 1
        %s190 = smul.addr %s189, 64
        %s191 = scalar_lea.vmem [#allocation4], %s190
        // Predicated region
        $region33: #{tpu_custom_call.1} parent=31 // pred_check
          %p192 = pneg %p61
        $region34: #{tpu_custom_call.1} parent=31 // pred_check_branch
          %194 = sbr.rel (%p192) target = $region36
        $region35: #{tpu_custom_call.1} parent=31 // pred_region
          %195 = dma.done %s188, 1024
        $region36: #{tpu_custom_call.1} parent=31 // pred_fallthru
          _
        %s196 = sand.u32 %s48, 1
        %s197 = scalar_lea.sflag [#allocation5], %s196
        %s198 = sand.u32 %s48, 1
        %s199 = smul.addr %s198, 64
        %s200 = scalar_lea.vmem [#allocation4], %s199
        %p201 = pneg %p61
        %p202 = pneg %p58
        %p203 = pneg %p82
        %p204 = pneg %p79
        %p205 = pneg %p103
        %p206 = pneg %p100
        %p207 = pneg %p129
        %p208 = pneg %p126
        %p209 = scmp.lt.s32.totalorder %s22, 1
        %s210 = scalar_select %p209, %s22, 1
        %s211 = smul.addr %s210, 4
        %s212 = smul.addr %s211, 8
        %s213 = scalar_lea.vmem %s3, %s212
        %s214 = smul.u32 4, %s23
        %s215 = smul.u32 2, %s24
        %p216 = scmp.lt.s32.totalorder %s22, 1
        %s217 = scalar_select %p216, %s22, 1
        %s218 = smul.addr %s217, 4
        %s219 = smul.addr %s218, 8
        %s220 = scalar_lea.vmem %s3, %s219
        %v221 = vld [vmem:[%s191] sm:$0xff]
        %v222 = vld [vmem:[%s191 + $0x8] sm:$0xff]
        %v223 = vld [vmem:[%s191 + $0x10] sm:$0xff]
        %v224 = vld [vmem:[%s191 + $0x18] sm:$0xff]
        %v225 = vld [vmem:[%s191 + $0x20] sm:$0xff]
        %v226 = vld [vmem:[%s191 + $0x28] sm:$0xff]
        %v227 = vld [vmem:[%s191 + $0x30] sm:$0xff]
        %v228 = vld [vmem:[%s191 + $0x38] sm:$0xff]
        %v229 = vadd.f32 %v221, %v222
        %230 = vadd.xlane.f32.xlu0 %v229
        %v231 = vpop.xlane.xlu0 %230
        %v232 = vadd.f32 %v223, %v224
        %233 = vadd.xlane.f32.xlu0 %v232
        %v234 = vpop.xlane.xlu0 %233
        %v235 = vadd.f32 %v225, %v226
        %236 = vadd.xlane.f32.xlu0 %v235
        %v237 = vpop.xlane.xlu0 %236
        %v238 = vadd.f32 %v227, %v228
        %239 = vadd.xlane.f32.xlu0 %v238
        %v240 = vpop.xlane.xlu0 %239
        %v241 = vmax.f32 %v221, %v222
        %242 = vmax.xlane.f32.xlu0 %v241
        %v243 = vpop.xlane.xlu0 %242
        %v244 = vmax.f32 %v223, %v224
        %245 = vmax.xlane.f32.xlu0 %v244
        %v246 = vpop.xlane.xlu0 %245
        %v247 = vmax.f32 %v225, %v226
        %248 = vmax.xlane.f32.xlu0 %v247
        %v249 = vpop.xlane.xlu0 %248
        %v250 = vmax.f32 %v227, %v228
        %251 = vmax.xlane.f32.xlu0 %v250
        %v252 = vpop.xlane.xlu0 %251
        %p253 = scmp.eq.s32.totalorder %s24, 0
        // Predicated region
        $region37: #{tpu_custom_call.1} parent=31 // pred_check
          %p254 = pneg %p253
        $region38: #{tpu_custom_call.1} parent=31 // pred_check_branch
          %256 = sbr.rel (%p254) target = $region40
        $region39: #{tpu_custom_call.1} parent=31 // pred_region
          %vm257 = vcmask 7168
          %258 = vst.msk [vmem:[#allocation2] sm:$0xff] %vm257, %v231
          %259 = vst.msk [vmem:[#allocation2 + $0x8] sm:$0xff] %vm257, %v234
          %260 = vst.msk [vmem:[#allocation2 + $0x10] sm:$0xff] %vm257, %v237
          %261 = vst.msk [vmem:[#allocation2 + $0x18] sm:$0xff] %vm257, %v240
          %262 = vst.msk [vmem:[#allocation3] sm:$0xff] %vm257, %v243
          %263 = vst.msk [vmem:[#allocation3 + $0x8] sm:$0xff] %vm257, %v246
          %264 = vst.msk [vmem:[#allocation3 + $0x10] sm:$0xff] %vm257, %v249
          %265 = vst.msk [vmem:[#allocation3 + $0x18] sm:$0xff] %vm257, %v252
        $region40: #{tpu_custom_call.1} parent=31 // pred_fallthru
          _
        %p266 = scmp.gt.s32.totalorder %s24, 0
        // Predicated region
        $region41: #{tpu_custom_call.1} parent=31 // pred_check
          %p267 = pneg %p266
        $region42: #{tpu_custom_call.1} parent=31 // pred_check_branch
          %269 = sbr.rel (%p267) target = $region44
        $region43: #{tpu_custom_call.1} parent=31 // pred_region
          %v270 = vld [vmem:[#allocation2] sm:$0xff]
          %v271 = vld [vmem:[#allocation2 + $0x8] sm:$0xff]
          %v272 = vld [vmem:[#allocation2 + $0x10] sm:$0xff]
          %v273 = vld [vmem:[#allocation2 + $0x18] sm:$0xff]
          %v274 = vadd.f32 %v270, %v231
          %v275 = vadd.f32 %v271, %v234
          %v276 = vadd.f32 %v272, %v237
          %v277 = vadd.f32 %v273, %v240
          %vm278 = vcmask 7168
          %279 = vst.msk [vmem:[#allocation2] sm:$0xff] %vm278, %v274
          %280 = vst.msk [vmem:[#allocation2 + $0x8] sm:$0xff] %vm278, %v275
          %281 = vst.msk [vmem:[#allocation2 + $0x10] sm:$0xff] %vm278, %v276
          %282 = vst.msk [vmem:[#allocation2 + $0x18] sm:$0xff] %vm278, %v277
          %v283 = vld [vmem:[#allocation3] sm:$0xff]
          %v284 = vld [vmem:[#allocation3 + $0x8] sm:$0xff]
          %v285 = vld [vmem:[#allocation3 + $0x10] sm:$0xff]
          %v286 = vld [vmem:[#allocation3 + $0x18] sm:$0xff]
          %v287 = vmax.f32 %v283, %v243
          %v288 = vmax.f32 %v284, %v246
          %v289 = vmax.f32 %v285, %v249
          %v290 = vmax.f32 %v286, %v252
          %291 = vst.msk [vmem:[#allocation3] sm:$0xff] %vm278, %v287
          %292 = vst.msk [vmem:[#allocation3 + $0x8] sm:$0xff] %vm278, %v288
          %293 = vst.msk [vmem:[#allocation3 + $0x10] sm:$0xff] %vm278, %v289
          %294 = vst.msk [vmem:[#allocation3 + $0x18] sm:$0xff] %vm278, %v290
        $region44: #{tpu_custom_call.1} parent=31 // pred_fallthru
          _
        %p295 = scmp.eq.s32.totalorder %s23, 0
        %p296 = pnand %p295, %p253
        %p297 = pneg %p296
        // Predicated region
        $region45: #{tpu_custom_call.1} parent=31 // pred_check
          _
        $region46: #{tpu_custom_call.1} parent=31 // pred_check_branch
          %299 = sbr.rel (%p296) target = $region48
        $region47: #{tpu_custom_call.1} parent=31 // pred_region
          %v300 = vld [vmem:[#allocation2] sm:$0xff]
          %v301 = vld [vmem:[#allocation2 + $0x8] sm:$0xff]
          %v302 = vld [vmem:[#allocation2 + $0x10] sm:$0xff]
          %v303 = vld [vmem:[#allocation2 + $0x18] sm:$0xff]
          %v304 = vld [vmem:[#allocation3] sm:$0xff]
          %v305 = vld [vmem:[#allocation3 + $0x8] sm:$0xff]
          %v306 = vld [vmem:[#allocation3 + $0x10] sm:$0xff]
          %v307 = vld [vmem:[#allocation3 + $0x18] sm:$0xff]
          %v308 = vmul.f32 %v300, 0.00390625
          %v309 = vmul.f32 %v301, 0.00390625
          %v310 = vmul.f32 %v302, 0.00390625
          %v311 = vmul.f32 %v303, 0.00390625
          %v312 = vld [vmem:[%s1] sm:$0xff]
          %v313 = vld [vmem:[%s1 + $0x8] sm:$0xff]
          %v314 = vld [vmem:[%s1 + $0x10] sm:$0xff]
          %v315 = vld [vmem:[%s1 + $0x18] sm:$0xff]
          %v316 = vld [vmem:[%s2] sm:$0xff]
          %v317 = vld [vmem:[%s2 + $0x8] sm:$0xff]
          %v318 = vld [vmem:[%s2 + $0x10] sm:$0xff]
          %v319 = vld [vmem:[%s2 + $0x18] sm:$0xff]
          %321 = vset.pattern.permute.xlu0 0
          %322 = vperm.xlu0 %321, %v308
          %v323 = vpop.permute.xlu0 %322
          %326 = vset.pattern.permute.xlu0 0
          %327 = vperm.xlu0 %326, %v309
          %v328 = vpop.permute.xlu0 %327
          %331 = vset.pattern.permute.xlu0 0
          %332 = vperm.xlu0 %331, %v310
          %v333 = vpop.permute.xlu0 %332
          %336 = vset.pattern.permute.xlu0 0
          %337 = vperm.xlu0 %336, %v311
          %v338 = vpop.permute.xlu0 %337
          %v340 = vmul.f32 %v312, %v323
          %v341 = vmul.f32 %v313, %v328
          %v342 = vmul.f32 %v314, %v333
          %v343 = vmul.f32 %v315, %v338
          %vm344 = vcmask 15360
          %v345 = vsel %vm344, %v340, 0.0
          %v346 = vsel %vm344, %v341, 0.0
          %v347 = vadd.f32 %v345, %v346
          %v348 = vsel %vm344, %v342, 0.0
          %v349 = vadd.f32 %v347, %v348
          %v350 = vsel %vm344, %v343, 0.0
          %v351 = vadd.f32 %v349, %v350
          %v352 = vrot.slane %v351, 4
          %v353 = vadd.f32 %v351, %v352
          %v354 = vrot.slane %v353, 2
          %v355 = vadd.f32 %v353, %v354
          %v356 = vrot.slane %v355, 1
          %v357 = vadd.f32 %v355, %v356
          %v358 = vmax.f32 %v357, 0.0
          %v359 = vmul.f32 %v316, %v358
          %v360 = vmul.f32 %v317, %v358
          %v361 = vmul.f32 %v318, %v358
          %v362 = vmul.f32 %v319, %v358
          %v363 = vsel %vm344, %v359, 0.0
          %364 = vadd.xlane.f32.xlu0 %v363
          %v365 = vpop.xlane.xlu0 %364
          %v366 = vsel %vm344, %v360, 0.0
          %367 = vadd.xlane.f32.xlu0 %v366
          %v368 = vpop.xlane.xlu0 %367
          %v369 = vsel %vm344, %v361, 0.0
          %370 = vadd.xlane.f32.xlu0 %v369
          %v371 = vpop.xlane.xlu0 %370
          %v372 = vsel %vm344, %v362, 0.0
          %373 = vadd.xlane.f32.xlu0 %v372
          %v374 = vpop.xlane.xlu0 %373
          %376 = vset.pattern.permute.xlu0 0
          %377 = vperm.xlu0 %376, %v304
          %v378 = vpop.permute.xlu0 %377
          %381 = vset.pattern.permute.xlu0 0
          %382 = vperm.xlu0 %381, %v305
          %v383 = vpop.permute.xlu0 %382
          %386 = vset.pattern.permute.xlu0 0
          %387 = vperm.xlu0 %386, %v306
          %v388 = vpop.permute.xlu0 %387
          %391 = vset.pattern.permute.xlu0 0
          %392 = vperm.xlu0 %391, %v307
          %v393 = vpop.permute.xlu0 %392
          %v395 = vmul.f32 %v312, %v378
          %v396 = vmul.f32 %v313, %v383
          %v397 = vmul.f32 %v314, %v388
          %v398 = vmul.f32 %v315, %v393
          %v399 = vsel %vm344, %v395, 0.0
          %v400 = vsel %vm344, %v396, 0.0
          %v401 = vadd.f32 %v399, %v400
          %v402 = vsel %vm344, %v397, 0.0
          %v403 = vadd.f32 %v401, %v402
          %v404 = vsel %vm344, %v398, 0.0
          %v405 = vadd.f32 %v403, %v404
          %v406 = vrot.slane %v405, 4
          %v407 = vadd.f32 %v405, %v406
          %v408 = vrot.slane %v407, 2
          %v409 = vadd.f32 %v407, %v408
          %v410 = vrot.slane %v409, 1
          %v411 = vadd.f32 %v409, %v410
          %v412 = vmax.f32 %v411, 0.0
          %v413 = vmul.f32 %v316, %v412
          %v414 = vmul.f32 %v317, %v412
          %v415 = vmul.f32 %v318, %v412
          %v416 = vmul.f32 %v319, %v412
          %v417 = vsel %vm344, %v413, 0.0
          %418 = vadd.xlane.f32.xlu0 %v417
          %v419 = vpop.xlane.xlu0 %418
          %v420 = vsel %vm344, %v414, 0.0
          %421 = vadd.xlane.f32.xlu0 %v420
          %v422 = vpop.xlane.xlu0 %421
          %v423 = vsel %vm344, %v415, 0.0
          %424 = vadd.xlane.f32.xlu0 %v423
          %v425 = vpop.xlane.xlu0 %424
          %v426 = vsel %vm344, %v416, 0.0
          %427 = vadd.xlane.f32.xlu0 %v426
          %v428 = vpop.xlane.xlu0 %427
          %v429 = vadd.f32 %v365, %v419
          %v430 = vadd.f32 %v368, %v422
          %v431 = vadd.f32 %v371, %v425
          %v432 = vadd.f32 %v374, %v428
          %v433 = vxor.u32 %v429, 2147483648
          %v434 = vxor.u32 %v430, 2147483648
          %v435 = vxor.u32 %v431, 2147483648
          %v436 = vxor.u32 %v432, 2147483648
          %v437 = vmul.f32 %v433, 1.442695
          %v438 = vpow.pop %v437
          %v439 = vmul.f32 %v434, 1.442695
          %v440 = vpow.pop %v439
          %v441 = vmul.f32 %v435, 1.442695
          %v442 = vpow.pop %v441
          %v443 = vmul.f32 %v436, 1.442695
          %v444 = vpow.pop %v443
          %v445 = vadd.f32 %v438, 1.0
          %v446 = vadd.f32 %v440, 1.0
          %v447 = vadd.f32 %v442, 1.0
          %v448 = vadd.f32 %v444, 1.0
          %v449 = vrcp.pop %v445
          %v450 = vmul.f32 1.0, %v449
          %v451 = vrcp.pop %v446
          %v452 = vmul.f32 1.0, %v451
          %v453 = vrcp.pop %v447
          %v454 = vmul.f32 1.0, %v453
          %v455 = vrcp.pop %v448
          %v456 = vmul.f32 1.0, %v455
          %vm457 = vcmask 7168
          %458 = vst.msk [vmem:[%s220] sm:$0xff] %vm457, %v450
          %459 = vst.msk [vmem:[%s220 + $0x8] sm:$0xff] %vm457, %v452
          %460 = vst.msk [vmem:[%s220 + $0x10] sm:$0xff] %vm457, %v454
          %461 = vst.msk [vmem:[%s220 + $0x18] sm:$0xff] %vm457, %v456
        $region48: #{tpu_custom_call.1} parent=31 // pred_fallthru
          _
        %p462 = scmp.lt.s32.totalorder %s22, 1
        %s463 = scalar_select %p462, %s22, 1
        %s464 = smul.addr %s463, 4
        %s465 = smul.addr %s464, 8
        %s466 = scalar_lea.vmem %s3, %s465
        // Predicated region
        $region49: #{tpu_custom_call.1} parent=31 // pred_check
          %p467 = pneg %p126
        $region50: #{tpu_custom_call.1} parent=31 // pred_check_branch
          %469 = sbr.rel (%p467) target = $region52
        $region51: #{tpu_custom_call.1} parent=31 // pred_region
          _
        $region52: #{tpu_custom_call.1} parent=31 // pred_fallthru
          _
      $region32: #{tpu_custom_call.1} parent=5 // pred_fallthru
        _
      %p470 = scmp.le.s32.totalorder 2, %s12
      // Predicated region
      $region53: #{tpu_custom_call.1} parent=5 // pred_check
        %p471 = pneg %p470
      $region54: #{tpu_custom_call.1} parent=5 // pred_check_branch
        %473 = sbr.rel (%p471) target = $region56
      $region55: #{tpu_custom_call.1} parent=5 // pred_region
        %s474 = ssub.s32 %s12, 2
        // Predicated region
        $region57: #{tpu_custom_call.1} parent=55 // pred_check
          %p475 = pneg %p132
        $region58: #{tpu_custom_call.1} parent=55 // pred_check_branch
          %477 = sbr.rel (%p475) target = $region60
        $region59: #{tpu_custom_call.1} parent=55 // pred_region
          %p478 = scmp.lt.s32.totalorder %s25, 1
          %s479 = scalar_select %p478, %s25, 1
          %s480 = smul.addr %s479, 4
          %s481 = smul.addr %s480, 8
          %s482 = scalar_lea.vmem %s3, %s481
        $region60: #{tpu_custom_call.1} parent=55 // pred_fallthru
          _
      $region56: #{tpu_custom_call.1} parent=5 // pred_fallthru
        _
    $region6: #{tpu_custom_call.1} parent=1 // loop_footer
      %s16 = sadd.s32 1, %s12
    $region7: #{tpu_custom_call.1} parent=1 // loop_footer_branch
      %11 = sbr.rel target = $region3
    $region8: #{tpu_custom_call.1} parent=1 // loop_exit
      _
    %483 = vsyncpa [#allocation5], 1
    %s484 = scalar_lea.sflag [#allocation5], 1
    %485 = vsyncpa %s484, 1

</llo_original>
